<compile_context>
chip_gen: v7x
topology: tpu7x:2x2x1
jax: 0.10.0
libtpu: 0.0.40
codegen_flags: <defaults>
</compile_context>

<pallas_src>
from typing import NamedTuple

import jax
import jax.numpy as jnp
from jax.experimental import pallas as pl
from jax.experimental.pallas import tpu as pltpu

HIDDEN = 100   # fixed by the module definition (nn.Linear(num_state, 100))
LANE = 128     # TPU lane width


def _round_up(n: int, m: int) -> int:
    return ((n + m - 1) // m) * m


class ActorParams(NamedTuple):
    """Kernel-ready (padded, bf16-cast) Actor parameters. Build once, reuse per call."""
    w1_p: jax.Array        # (num_state, 128) bf16
    b1_p: jax.Array        # (1, 128) f32
    w2_p: jax.Array        # (128, action_pad) bf16, pad columns exactly 0
    b2_p: jax.Array        # (1, action_pad) f32, pad lanes = -1e30 (softmax mask)
    num_action: int


def prepare_actor_params(w1, b1, w2, b2) -> ActorParams:
    """One-time pad + bf16 cast of the weights (hoisted out of the forward hot path).

    w1: (num_state, HIDDEN), b1: (HIDDEN,) or (1, HIDDEN),
    w2: (HIDDEN, num_action), b2: (num_action,) or (1, num_action).
    """
    num_state = w1.shape[0]
    num_action = w2.shape[1]
    hidden_pad = _round_up(HIDDEN, LANE)       # 100 -> 128
    action_pad = _round_up(num_action, LANE)   # num_action -> 128 (lane-dense output)

    w1_p = jnp.zeros((num_state, hidden_pad), jnp.bfloat16).at[:, :HIDDEN].set(
        w1.astype(jnp.bfloat16))
    b1_p = jnp.zeros((1, hidden_pad), jnp.float32).at[:, :HIDDEN].set(
        jnp.reshape(b1, (1, -1)).astype(jnp.float32))
    # W2 pad columns stay exactly zero ...
    w2_p = jnp.zeros((hidden_pad, action_pad), jnp.bfloat16).at[:HIDDEN, :num_action].set(
        w2.astype(jnp.bfloat16))
    # ... so baking -1e30 into the padded lanes of b2 makes padded logits exactly
    # -1e30; they underflow to 0 in the stable softmax.  This replaces the in-kernel
    # iota/compare/select mask.
    b2_p = jnp.full((1, action_pad), -1e30, jnp.float32).at[:, :num_action].set(
        jnp.reshape(b2, (1, -1)).astype(jnp.float32))
    return ActorParams(w1_p, b1_p, w2_p, b2_p, num_action)


def _actor_kernel(x_ref, w1_ref, b1_ref, w2_ref, b2_ref, out_ref):
    # ---- fc1 + ReLU (bf16 MXU matmul, f32 accumulate, f32 elementwise) ----
    x = x_ref[...].astype(jnp.bfloat16)                                # VPU cast, cheap
    h = jnp.dot(x, w1_ref[...], preferred_element_type=jnp.float32)    # (TB, 128) f32
    h = jnp.maximum(h + b1_ref[...], 0.0)

    # ---- action_head (bf16 MXU matmul, f32 accumulate) ----
    # Padded lanes get 0 (zero W2 columns) + (-1e30) from b2 -> masked out of softmax.
    logits = jnp.dot(h.astype(jnp.bfloat16), w2_ref[...],
                     preferred_element_type=jnp.float32) + b2_ref[...]  # (TB, A_PAD) f32

    # ---- numerically-stable softmax (padded lanes underflow to exactly 0) ----
    m = jnp.max(logits, axis=1, keepdims=True)
    e = jnp.exp(logits - m)
    denom = jnp.sum(e, axis=1, keepdims=True)          # >= 1 (max lane contributes 1)
    r = pl.reciprocal(denom, approx=True)              # EUP vrcp (otherwise idle slot)
    r = r * (2.0 - denom * r)                          # one Newton step -> ~f32 accurate
    out_ref[...] = (e * r).astype(out_ref.dtype)


def _choose_tile(batch: int, tile_b: int) -> int:
    """Pick a batch tile (multiple of 8).  Big tiles amortize the ~0.35us/step pipeline
    overhead; if the whole batch would fit in one tile but is big enough to split, use
    two tiles so v7x's two TensorCores can both work the "parallel" batch axis."""
    tb = min(tile_b, _round_up(batch, 8))
    if batch >= 16 and pl.cdiv(_round_up(batch, 8), tb) < 2:
        tb = _round_up(pl.cdiv(batch, 2), 8)
    return tb


def actor_forward(x, params: ActorParams, *, tile_b: int = 1024):
    """x: (B, num_state) float; params from prepare_actor_params().
    Returns action probabilities (B, num_action) f32.

    tile_b default 1024 keeps double-buffered x/out tiles + f32 temps to a few MiB
    (well under even v7x's 32 MiB scoped-VMEM default); cap at ~2048-4096 on v7x if
    raised further."""
    x = x.astype(jnp.float32)
    B, num_state = x.shape
    w1_p, b1_p, w2_p, b2_p, num_action = params
    hidden_pad = w1_p.shape[1]
    action_pad = w2_p.shape[1]

    tb = _choose_tile(B, tile_b)
    b_pad = _round_up(B, tb)

    # Only batch-pad (and only when needed); no feature-axis pad, no XLA-side cast pass.
    x_in = x if b_pad == B else jnp.zeros((b_pad, num_state), jnp.float32).at[:B, :].set(x)

    grid = (b_pad // tb,)
    out_pad = pl.pallas_call(
        _actor_kernel,
        out_shape=jax.ShapeDtypeStruct((b_pad, action_pad), jnp.float32),
        grid=grid,
        in_specs=[
            pl.BlockSpec((tb, num_state), lambda i: (i, 0)),            # x: batch-tiled
            pl.BlockSpec((num_state, hidden_pad), lambda i: (0, 0)),    # W1: resident
            pl.BlockSpec((1, hidden_pad), lambda i: (0, 0)),            # b1: resident
            pl.BlockSpec((hidden_pad, action_pad), lambda i: (0, 0)),   # W2: resident
            pl.BlockSpec((1, action_pad), lambda i: (0, 0)),            # b2: resident
        ],
        out_specs=pl.BlockSpec((tb, action_pad), lambda i: (i, 0)),
        compiler_params=pltpu.CompilerParams(
            dimension_semantics=("parallel",),  # v7x: shard batch tiles across both TCs
        ),
    )(x_in, w1_p, b1_p, w2_p, b2_p)

    # Slice away batch + lane padding.  When jitted with a downstream consumer this
    # stays a cheap view-like slice; callers that can consume (B, 128) directly may
    # skip it to avoid the re-read entirely.
    return out_pad[:B, :num_action]


def init_actor_params(key, num_state, num_action):
    """Deterministic init mimicking PyTorch Linear default U(-1/sqrt(fan_in), 1/sqrt(fan_in)).
    Weights stored as (in, out); PyTorch stores (out, in)."""
    k1, k2, k3, k4 = jax.random.split(key, 4)
    bound1 = 1.0 / jnp.sqrt(num_state)
    bound2 = 1.0 / jnp.sqrt(HIDDEN)
    w1 = jax.random.uniform(k1, (num_state, HIDDEN), jnp.float32, -bound1, bound1)
    b1 = jax.random.uniform(k2, (HIDDEN,), jnp.float32, -bound1, bound1)
    w2 = jax.random.uniform(k3, (HIDDEN, num_action), jnp.float32, -bound2, bound2)
    b2 = jax.random.uniform(k4, (num_action,), jnp.float32, -bound2, bound2)
    return w1, b1, w2, b2


def actor_reference_f32(x, w1, b1, w2, b2):
    """Full-precision reference of the original module."""
    h = jnp.maximum(x @ w1 + b1[None, :], 0.0)
    return jax.nn.softmax(h @ w2 + b2[None, :], axis=1)


def actor_reference_bf16(x, w1, b1, w2, b2):
    """Reference with the same bf16 quantization of MXU operands as the kernel."""
    xb = x.astype(jnp.bfloat16).astype(jnp.float32)
    w1b = w1.astype(jnp.bfloat16).astype(jnp.float32)
    w2b = w2.astype(jnp.bfloat16).astype(jnp.float32)
    h = jnp.maximum(xb @ w1b + b1[None, :], 0.0)
    hb = h.astype(jnp.bfloat16).astype(jnp.float32)
    return jax.nn.softmax(hb @ w2b + b2[None, :], axis=1)


if __name__ == "__main__":
    num_state, num_action = 32, 8

    key = jax.random.PRNGKey(0)
    kx, kp, kx2 = jax.random.split(key, 3)
    w1, b1, w2, b2 = init_actor_params(kp, num_state, num_action)
    params = prepare_actor_params(w1, b1, w2, b2)   # one-time pad/cast, reused below

    # --- small batch (single tile, batch padded 4 -> 8) ---
    batch = 4
    x = jax.random.normal(kx, (batch, num_state), jnp.float32)
    probs = actor_forward(x, params)
    jax.block_until_ready(probs)
    assert probs.shape == (batch, num_action)

    ref_q = actor_reference_bf16(x, w1, b1, w2, b2)
    assert jnp.allclose(probs, ref_q, atol=2e-5, rtol=2e-5)
    ref = actor_reference_f32(x, w1, b1, w2, b2)
    assert jnp.allclose(probs, ref, atol=5e-3, rtol=5e-3)
    assert jnp.allclose(jnp.sum(probs, axis=1), 1.0, atol=1e-5)

    # --- slightly larger batch (exercises the >=2-tile / megacore path + padding) ---
    batch2 = 40
    x2 = jax.random.normal(kx2, (batch2, num_state), jnp.float32)
    probs2 = actor_forward(x2, params)
    jax.block_until_ready(probs2)
    assert probs2.shape == (batch2, num_action)
    assert jnp.allclose(probs2, actor_reference_bf16(x2, w1, b1, w2, b2),
                        atol=2e-5, rtol=2e-5)
    assert jnp.allclose(jnp.sum(probs2, axis=1), 1.0, atol=1e-5)

    print("KERNEL_OK")
</pallas_src>

<mosaic_0001>
module attributes {stable_mosaic.version = 11 : i64} {
  func.func @_actor_kernel(%arg0: i32, %arg1: memref<8x32xf32, #tpu.memory_space<vmem>>, %arg2: memref<32x128xbf16, #tpu.memory_space<vmem>>, %arg3: memref<1x128xf32, #tpu.memory_space<vmem>>, %arg4: memref<128x128xbf16, #tpu.memory_space<vmem>>, %arg5: memref<1x128xf32, #tpu.memory_space<vmem>>, %arg6: memref<8x128xf32, #tpu.memory_space<vmem>>) attributes {dimension_semantics = [#tpu.dimension_semantics<parallel>], iteration_bounds = array<i64: 1>, scalar_prefetch = 0 : i64, scratch_operands = 0 : i64, tpu.core_type = #tpu.core_type<tc>, window_params = [{transform_indices = @transform_0, window_bounds = array<i64: 8, 32>}, {pipeline_mode = #tpu.pipeline_mode<synchronous>, transform_indices = @transform_1, window_bounds = array<i64: 32, 128>}, {pipeline_mode = #tpu.pipeline_mode<synchronous>, transform_indices = @transform_2, window_bounds = array<i64: 1, 128>}, {pipeline_mode = #tpu.pipeline_mode<synchronous>, transform_indices = @transform_3, window_bounds = array<i64: 128, 128>}, {pipeline_mode = #tpu.pipeline_mode<synchronous>, transform_indices = @transform_4, window_bounds = array<i64: 1, 128>}, {transform_indices = @transform_5, window_bounds = array<i64: 8, 128>}]} {
    %c0 = arith.constant 0 : index
    %c0_0 = arith.constant 0 : index
    %0 = vector.load %arg1[%c0, %c0_0] : memref<8x32xf32, #tpu.memory_space<vmem>>, vector<8x32xf32>
    %1 = arith.truncf %0 : vector<8x32xf32> to vector<8x32xbf16>
    %c0_1 = arith.constant 0 : index
    %c0_2 = arith.constant 0 : index
    %2 = vector.load %arg2[%c0_1, %c0_2] : memref<32x128xbf16, #tpu.memory_space<vmem>>, vector<32x128xbf16>
    %cst = arith.constant dense<0.000000e+00> : vector<8x128xf32>
    %3 = tpu.matmul %1, %2, %cst {dimension_numbers = #tpu.dot_dimension_numbers<[1], [0], [0], [1], [0, 0, 1, 1], [], []>} : vector<8x32xbf16>, vector<32x128xbf16>, vector<8x128xf32> -> vector<8x128xf32>
    %c0_3 = arith.constant 0 : index
    %c0_4 = arith.constant 0 : index
    %4 = vector.load %arg3[%c0_3, %c0_4] : memref<1x128xf32, #tpu.memory_space<vmem>>, vector<1x128xf32>
    %5 = vector.broadcast %4 : vector<1x128xf32> to vector<8x128xf32>
    %6 = arith.addf %3, %5 : vector<8x128xf32>
    %cst_5 = arith.constant 0.000000e+00 : f32
    %7 = vector.broadcast %cst_5 : f32 to vector<8x128xf32>
    %8 = arith.maximumf %6, %7 : vector<8x128xf32>
    %9 = arith.truncf %8 : vector<8x128xf32> to vector<8x128xbf16>
    %c0_6 = arith.constant 0 : index
    %c0_7 = arith.constant 0 : index
    %10 = vector.load %arg4[%c0_6, %c0_7] : memref<128x128xbf16, #tpu.memory_space<vmem>>, vector<128x128xbf16>
    %cst_8 = arith.constant dense<0.000000e+00> : vector<8x128xf32>
    %11 = tpu.matmul %9, %10, %cst_8 {dimension_numbers = #tpu.dot_dimension_numbers<[1], [0], [0], [1], [0, 0, 1, 1], [], []>} : vector<8x128xbf16>, vector<128x128xbf16>, vector<8x128xf32> -> vector<8x128xf32>
    %c0_9 = arith.constant 0 : index
    %c0_10 = arith.constant 0 : index
    %12 = vector.load %arg5[%c0_9, %c0_10] : memref<1x128xf32, #tpu.memory_space<vmem>>, vector<1x128xf32>
    %13 = vector.broadcast %12 : vector<1x128xf32> to vector<8x128xf32>
    %14 = arith.addf %11, %13 : vector<8x128xf32>
    %cst_11 = arith.constant dense<0xFF800000> : vector<8xf32>
    %15 = vector.multi_reduction <maximumf>, %14, %cst_11 [1] : vector<8x128xf32> to vector<8xf32>
    %16 = vector.shape_cast %15 : vector<8xf32> to vector<8x1xf32>
    %17 = vector.broadcast %16 : vector<8x1xf32> to vector<8x128xf32>
    %18 = arith.subf %14, %17 : vector<8x128xf32>
    %19 = math.exp %18 : vector<8x128xf32>
    %cst_12 = arith.constant dense<0.000000e+00> : vector<8xf32>
    %20 = vector.multi_reduction <add>, %19, %cst_12 [1] : vector<8x128xf32> to vector<8xf32>
    %21 = vector.shape_cast %20 : vector<8xf32> to vector<8x1xf32>
    %22 = tpu.reciprocal %21 {approx = true} : vector<8x1xf32> -> vector<8x1xf32>
    %23 = arith.mulf %21, %22 : vector<8x1xf32>
    %cst_13 = arith.constant 2.000000e+00 : f32
    %24 = vector.broadcast %cst_13 : f32 to vector<8x1xf32>
    %25 = arith.subf %24, %23 : vector<8x1xf32>
    %26 = arith.mulf %22, %25 : vector<8x1xf32>
    %27 = vector.broadcast %26 : vector<8x1xf32> to vector<8x128xf32>
    %28 = arith.mulf %19, %27 : vector<8x128xf32>
    %c0_14 = arith.constant 0 : index
    %c0_15 = arith.constant 0 : index
    %29 = vector.load %arg6[%c0_14, %c0_15] : memref<8x128xf32, #tpu.memory_space<vmem>>, vector<8x128xf32>
    tpu.vector_store %arg6[%c0_14, %c0_15], %28 {strides = array<i32>} : memref<8x128xf32, #tpu.memory_space<vmem>>, vector<8x128xf32>,
    return
  }
  func.func @transform_0(%arg0: i32) -> (i32, i32) {
    %c0_i32 = arith.constant 0 : i32
    %c0_i32_0 = arith.constant 0 : i32
    return %arg0, %c0_i32 : i32, i32
  }
  func.func @transform_1(%arg0: i32) -> (i32, i32) {
    %c0_i32 = arith.constant 0 : i32
    %c0_i32_0 = arith.constant 0 : i32
    %c0_i32_1 = arith.constant 0 : i32
    return %c0_i32, %c0_i32_0 : i32, i32
  }
  func.func @transform_2(%arg0: i32) -> (i32, i32) {
    %c0_i32 = arith.constant 0 : i32
    %c0_i32_0 = arith.constant 0 : i32
    %c0_i32_1 = arith.constant 0 : i32
    return %c0_i32, %c0_i32_0 : i32, i32
  }
  func.func @transform_3(%arg0: i32) -> (i32, i32) {
    %c0_i32 = arith.constant 0 : i32
    %c0_i32_0 = arith.constant 0 : i32
    %c0_i32_1 = arith.constant 0 : i32
    return %c0_i32, %c0_i32_0 : i32, i32
  }
  func.func @transform_4(%arg0: i32) -> (i32, i32) {
    %c0_i32 = arith.constant 0 : i32
    %c0_i32_0 = arith.constant 0 : i32
    %c0_i32_1 = arith.constant 0 : i32
    return %c0_i32, %c0_i32_0 : i32, i32
  }
  func.func @transform_5(%arg0: i32) -> (i32, i32) {
    %c0_i32 = arith.constant 0 : i32
    %c0_i32_0 = arith.constant 0 : i32
    return %arg0, %c0_i32 : i32, i32
  }
}

</mosaic_0001>

<llo_original>
// kernel: tpu_custom_call.1
$region0: #{tpu_custom_call.1}
  #allocation0 [shape = 'u32[]', space=smem, size = 0x4, offset = 0x4, fixed_abs, tag = 'smem constant byte address 0x4 - core index']
  #allocation1 [shape = 'u32[144,128]{1,0:T(1,128)}', space=vmem, size = 0x12000, scoped, tag = 'internal scratch']
  %s0 = inlined_call_operand.hbm [shape: f32[8,32], index: 0, kind: input, shape index: {}]
  %s1 = inlined_call_operand.hbm [shape: bf16[32,128], index: 1, kind: input, shape index: {}]
  %s2 = inlined_call_operand.vmem [shape: f32[1,128], index: 2, kind: input, shape index: {}]
  %s3 = inlined_call_operand.hbm [shape: bf16[128,128], index: 3, kind: input, shape index: {}]
  %s4 = inlined_call_operand.vmem [shape: f32[1,128], index: 4, kind: input, shape index: {}]
  %s5 = inlined_call_operand.hbm [shape: f32[8,128], index: 5, kind: output, shape index: {}]
  %s6 = sld [smem:[#allocation0]]
  $region42: #{tpu_custom_call.1} parent=0
    _
  %s8 = ssub.s32 1, %s6
  %s9 = scalar_select 0, %s8, %s6
  $region1: #{tpu_custom_call.1} parent=0
    #allocation2 [shape = 'u8[4096]{0}', space=vmem, size = 0x1000, scoped, tag = 'input window, operand 0, single buffered']
    #allocation3 [shape = 's32[1]{0}', space=sflag, size = 0x4, scoped, tag = 'scoped memory for tpu_custom_call.1']
    #allocation4 [shape = 's32[1]{0}', space=sflag, size = 0x4, scoped, tag = 'scoped memory for tpu_custom_call.1']
    #allocation5 [shape = 'u8[8192]{0}', space=vmem, size = 0x2000, scoped, tag = 'input window, operand 1, single buffered']
    #allocation6 [shape = 's32[1]{0}', space=sflag, size = 0x4, scoped, tag = 'scoped memory for tpu_custom_call.1']
    #allocation7 [shape = 'u8[32768]{0}', space=vmem, size = 0x8000, scoped, tag = 'input window, operand 3, single buffered']
    #allocation8 [shape = 'u8[4096]{0}', space=vmem, size = 0x1000, scoped, tag = 'output window, operand 0, single buffered']
    %10 = vsyncpa [#allocation3], 0
    %11 = vsyncpa [#allocation6], 0
    %12 = vsyncpa [#allocation4], 0
    // Predicated region
    $region2: #{tpu_custom_call.1} parent=1 // pred_check
      _
    $region3: #{tpu_custom_call.1} parent=1 // pred_check_branch
      %14 = sbr.rel (0) target = $region5
    $region4: #{tpu_custom_call.1} parent=1 // pred_region
      %s16 = ssub.s32 128, 128
      %17 = vsyncadd [#allocation3], %s16
      %s19 = sshll.u32 [#allocation2], 4
      %s20 = int_to_ptr.vmem [resolvable:$true] %s19
      %22 = dma.hbm_to_vmem [thread:$0]  %s0, 128, %s20, [#allocation3]
    $region5: #{tpu_custom_call.1} parent=1 // pred_fallthru
      _
    // Predicated region
    $region6: #{tpu_custom_call.1} parent=1 // pred_check
      _
    $region7: #{tpu_custom_call.1} parent=1 // pred_check_branch
      %24 = sbr.rel (0) target = $region9
    $region8: #{tpu_custom_call.1} parent=1 // pred_region
      %s26 = ssub.s32 256, 256
      %27 = vsyncadd [#allocation6], %s26
      %s28 = sshll.u32 [#allocation5], 4
      %s29 = int_to_ptr.vmem [resolvable:$true] %s28
      %34 = dma.hbm_to_vmem [thread:$0]  %s1, 256, %s29, [#allocation6], 64, 64, 4
    $region9: #{tpu_custom_call.1} parent=1 // pred_fallthru
      _
    // Predicated region
    $region10: #{tpu_custom_call.1} parent=1 // pred_check
      _
    $region11: #{tpu_custom_call.1} parent=1 // pred_check_branch
      %36 = sbr.rel (0) target = $region13
    $region12: #{tpu_custom_call.1} parent=1 // pred_region
      _
    $region13: #{tpu_custom_call.1} parent=1 // pred_fallthru
      _
    // Predicated region
    $region14: #{tpu_custom_call.1} parent=1 // pred_check
      _
    $region15: #{tpu_custom_call.1} parent=1 // pred_check_branch
      %38 = sbr.rel (0) target = $region17
    $region16: #{tpu_custom_call.1} parent=1 // pred_region
      %s40 = ssub.s32 1024, 1024
      %41 = vsyncadd [#allocation6], %s40
      %s42 = sshll.u32 [#allocation7], 4
      %s43 = int_to_ptr.vmem [resolvable:$true] %s42
      %48 = dma.hbm_to_vmem [thread:$0]  %s3, 1024, %s43, [#allocation6], 64, 64, 4
    $region17: #{tpu_custom_call.1} parent=1 // pred_fallthru
      _
    // Predicated region
    $region18: #{tpu_custom_call.1} parent=1 // pred_check
      _
    $region19: #{tpu_custom_call.1} parent=1 // pred_check_branch
      %50 = sbr.rel (0) target = $region21
    $region20: #{tpu_custom_call.1} parent=1 // pred_region
      _
    $region21: #{tpu_custom_call.1} parent=1 // pred_fallthru
      _
    // Predicated region
    $region22: #{tpu_custom_call.1} parent=1 // pred_check
      _
    $region23: #{tpu_custom_call.1} parent=1 // pred_check_branch
      %52 = sbr.rel (0) target = $region25
    $region24: #{tpu_custom_call.1} parent=1 // pred_region
      %53 = dma.done [#allocation3], 128
    $region25: #{tpu_custom_call.1} parent=1 // pred_fallthru
      _
    // Predicated region
    $region26: #{tpu_custom_call.1} parent=1 // pred_check
      _
    $region27: #{tpu_custom_call.1} parent=1 // pred_check_branch
      %55 = sbr.rel (0) target = $region29
    $region28: #{tpu_custom_call.1} parent=1 // pred_region
      %56 = dma.done [#allocation6], 256
    $region29: #{tpu_custom_call.1} parent=1 // pred_fallthru
      _
    // Predicated region
    $region30: #{tpu_custom_call.1} parent=1 // pred_check
      _
    $region31: #{tpu_custom_call.1} parent=1 // pred_check_branch
      %58 = sbr.rel (0) target = $region33
    $region32: #{tpu_custom_call.1} parent=1 // pred_region
      %59 = dma.done [#allocation6], 1024
    $region33: #{tpu_custom_call.1} parent=1 // pred_fallthru
      _
    %v61 = vld [vmem:[#allocation2] sm:$0xff]
    %v62 = vpack.c.bf16 %v61, %v61
    %v63 = vld [vmem:[#allocation5] sm:$0xf]
    %v64 = vld [vmem:[#allocation5 + $0x4] sm:$0xf]
    %v65 = vld [vmem:[#allocation5 + $0x8] sm:$0xf]
    %v66 = vld [vmem:[#allocation5 + $0xc] sm:$0xf]
    %v67 = vld [vmem:[%s2] sm:$0x1]
    %v69 = vlaneseq
    %v70 = vshrl.u32 %v69, 7
    %v71 = vsub.s32 0, %v70
    %v72 = vrot.slane %v67, %v71
    %v78 = vunpack.c.l.b16 %v63
    %v79 = vunpack.c.l.b16 %v64
    %v80 = vunpack.c.l.b16 %v65
    %v81 = vunpack.c.l.b16 %v66
    %v82 = vpack.c.b16 %v79, %v78
    %v83 = vpack.c.b16 %v81, %v80
    %vm86 = vcmask 261120
    %v88 = vsel %vm86, %v62, 0
    %90 = vmatprep.subr.bf16.mxu0 0
    %91 = vmatpush1.bf16.msra.mxu0 %v82
    %92 = vmatprep.subr.bf16.mxu0 0
    %93 = vmatpush1.bf16.msra.mxu0 %v83
    %94 = vmatprep.subr.bf16.mxu0 0
    %95 = vmatpush1.bf16.msra.mxu0 0
    %96 = vmatprep.subr.bf16.mxu0 0
    %97 = vmatpush1.bf16.msra.mxu0 0
    %98 = vmatprep.subr.bf16.mxu0 0
    %99 = vmatpush1.bf16.msra.mxu0 0
    %100 = vmatprep.subr.bf16.mxu0 0
    %101 = vmatpush1.bf16.msra.mxu0 0
    %102 = vmatprep.subr.bf16.mxu0 0
    %103 = vmatpush1.bf16.msra.mxu0 0
    %104 = vmatprep.subr.bf16.mxu0 0
    %105 = vmatpush1.bf16.msra.mxu0 0
    %106 = vmatprep.subr.bf16.mxu0 0
    %107 = vmatpush1.bf16.msra.mxu0 0
    %108 = vmatprep.subr.bf16.mxu0 0
    %109 = vmatpush1.bf16.msra.mxu0 0
    %110 = vmatprep.subr.bf16.mxu0 0
    %111 = vmatpush1.bf16.msra.mxu0 0
    %112 = vmatprep.subr.bf16.mxu0 0
    %113 = vmatpush1.bf16.msra.mxu0 0
    %114 = vmatprep.subr.bf16.mxu0 0
    %115 = vmatpush1.bf16.msra.mxu0 0
    %116 = vmatprep.subr.bf16.mxu0 0
    %117 = vmatpush1.bf16.msra.mxu0 0
    %118 = vmatprep.subr.bf16.mxu0 0
    %119 = vmatpush1.bf16.msra.mxu0 0
    %120 = vmatprep.subr.bf16.mxu0 0
    %121 = vmatpush1.bf16.msra.mxu0 0
    %122 = vmatprep.mubr.bf16.mxu0 0
    %123 = vmatmul.mubr.bf16.gmra.mrb[0].mxu0 %v88
    %v124 = vpop.f32.mrb[0].mxu0
    %v125 = vadd.f32 %v72, %v124
    %v126 = vpop.f32.mrb[0].mxu0
    %v127 = vpop.f32.mrb[0].mxu0
    %v128 = vpop.f32.mrb[0].mxu0
    %129 = vdwg.mxu0
    %v130 = vmax.f32 %v125, 0.0
    %v131 = vpack.c.bf16 %v130, %v130
    %v132 = vld [vmem:[#allocation7] sm:$0xf]
    %v133 = vld [vmem:[#allocation7 + $0x4] sm:$0xf]
    %v134 = vld [vmem:[#allocation7 + $0x8] sm:$0xf]
    %v135 = vld [vmem:[#allocation7 + $0xc] sm:$0xf]
    %v136 = vld [vmem:[#allocation7 + $0x10] sm:$0xf]
    %v137 = vld [vmem:[#allocation7 + $0x14] sm:$0xf]
    %v138 = vld [vmem:[#allocation7 + $0x18] sm:$0xf]
    %v139 = vld [vmem:[#allocation7 + $0x1c] sm:$0xf]
    %v140 = vld [vmem:[#allocation7 + $0x20] sm:$0xf]
    %v141 = vld [vmem:[#allocation7 + $0x24] sm:$0xf]
    %v142 = vld [vmem:[#allocation7 + $0x28] sm:$0xf]
    %v143 = vld [vmem:[#allocation7 + $0x2c] sm:$0xf]
    %v144 = vld [vmem:[#allocation7 + $0x30] sm:$0xf]
    %v145 = vld [vmem:[#allocation7 + $0x34] sm:$0xf]
    %v146 = vld [vmem:[#allocation7 + $0x38] sm:$0xf]
    %v147 = vld [vmem:[#allocation7 + $0x3c] sm:$0xf]
    %v148 = vld [vmem:[%s4] sm:$0x1]
    %v150 = vlaneseq
    %v151 = vshrl.u32 %v150, 7
    %v152 = vsub.s32 0, %v151
    %v153 = vrot.slane %v148, %v152
    %v171 = vunpack.c.l.b16 %v132
    %v172 = vunpack.c.l.b16 %v133
    %v173 = vunpack.c.l.b16 %v134
    %v174 = vunpack.c.l.b16 %v135
    %v175 = vunpack.c.l.b16 %v136
    %v176 = vunpack.c.l.b16 %v137
    %v177 = vunpack.c.l.b16 %v138
    %v178 = vunpack.c.l.b16 %v139
    %v179 = vunpack.c.l.b16 %v140
    %v180 = vunpack.c.l.b16 %v141
    %v181 = vunpack.c.l.b16 %v142
    %v182 = vunpack.c.l.b16 %v143
    %v183 = vunpack.c.l.b16 %v144
    %v184 = vunpack.c.l.b16 %v145
    %v185 = vunpack.c.l.b16 %v146
    %v186 = vunpack.c.l.b16 %v147
    %v187 = vpack.c.b16 %v172, %v171
    %v188 = vpack.c.b16 %v174, %v173
    %v189 = vpack.c.b16 %v176, %v175
    %v190 = vpack.c.b16 %v178, %v177
    %v191 = vpack.c.b16 %v180, %v179
    %v192 = vpack.c.b16 %v182, %v181
    %v193 = vpack.c.b16 %v184, %v183
    %v194 = vpack.c.b16 %v186, %v185
    %203 = vmatprep.subr.bf16.mxu0 0
    %204 = vmatpush1.bf16.msra.mxu0 %v187
    %205 = vmatprep.subr.bf16.mxu0 0
    %206 = vmatpush1.bf16.msra.mxu0 %v188
    %207 = vmatprep.subr.bf16.mxu0 0
    %208 = vmatpush1.bf16.msra.mxu0 %v189
    %209 = vmatprep.subr.bf16.mxu0 0
    %210 = vmatpush1.bf16.msra.mxu0 %v190
    %211 = vmatprep.subr.bf16.mxu0 0
    %212 = vmatpush1.bf16.msra.mxu0 %v191
    %213 = vmatprep.subr.bf16.mxu0 0
    %214 = vmatpush1.bf16.msra.mxu0 %v192
    %215 = vmatprep.subr.bf16.mxu0 0
    %216 = vmatpush1.bf16.msra.mxu0 %v193
    %217 = vmatprep.subr.bf16.mxu0 0
    %218 = vmatpush1.bf16.msra.mxu0 %v194
    %219 = vmatprep.subr.bf16.mxu0 0
    %220 = vmatpush1.bf16.msra.mxu0 0
    %221 = vmatprep.subr.bf16.mxu0 0
    %222 = vmatpush1.bf16.msra.mxu0 0
    %223 = vmatprep.subr.bf16.mxu0 0
    %224 = vmatpush1.bf16.msra.mxu0 0
    %225 = vmatprep.subr.bf16.mxu0 0
    %226 = vmatpush1.bf16.msra.mxu0 0
    %227 = vmatprep.subr.bf16.mxu0 0
    %228 = vmatpush1.bf16.msra.mxu0 0
    %229 = vmatprep.subr.bf16.mxu0 0
    %230 = vmatpush1.bf16.msra.mxu0 0
    %231 = vmatprep.subr.bf16.mxu0 0
    %232 = vmatpush1.bf16.msra.mxu0 0
    %233 = vmatprep.subr.bf16.mxu0 0
    %234 = vmatpush1.bf16.msra.mxu0 0
    %235 = vmatprep.mubr.bf16.mxu0 0
    %236 = vmatmul.mubr.bf16.gmra.mrb[0].mxu0 %v131
    %v237 = vpop.f32.mrb[0].mxu0
    %v238 = vadd.f32 %v153, %v237
    %v239 = vpop.f32.mrb[0].mxu0
    %v240 = vpop.f32.mrb[0].mxu0
    %v241 = vpop.f32.mrb[0].mxu0
    %242 = vdwg.mxu0
    %243 = vmax.xlane.f32.xlu0 %v238
    %v244 = vpop.xlane.xlu0 %243
    %v245 = vsub.f32 %v238, %v244
    %v246 = vmul.f32 %v245, 1.442695
    %v247 = vpow.pop %v246
    %248 = vadd.xlane.f32.xlu0 %v247
    %v249 = vpop.xlane.xlu0 %248
    %v250 = vrcp.pop %v249
    %v251 = vmul.f32 %v249, %v250
    %v252 = vsub.f32 2.0, %v251
    %v253 = vmul.f32 %v250, %v252
    %v254 = vmul.f32 %v247, %v253
    %255 = vst [vmem:[#allocation8] sm:$0xff] %v254
    // Predicated region
    $region34: #{tpu_custom_call.1} parent=1 // pred_check
      _
    $region35: #{tpu_custom_call.1} parent=1 // pred_check_branch
      %257 = sbr.rel (0) target = $region37
    $region36: #{tpu_custom_call.1} parent=1 // pred_region
      %s259 = ssub.s32 128, 128
      %260 = vsyncadd [#allocation4], %s259
      %s262 = sshll.u32 [#allocation8], 4
      %s263 = int_to_ptr.vmem [resolvable:$true] %s262
      %265 = dma.vmem_to_hbm [thread:$0]  %s263, 128, %s5, [#allocation4]
    $region37: #{tpu_custom_call.1} parent=1 // pred_fallthru
      _
    // Predicated region
    $region38: #{tpu_custom_call.1} parent=1 // pred_check
      _
    $region39: #{tpu_custom_call.1} parent=1 // pred_check_branch
      %267 = sbr.rel (0) target = $region41
    $region40: #{tpu_custom_call.1} parent=1 // pred_region
      %268 = dma.done [#allocation4], 128
    $region41: #{tpu_custom_call.1} parent=1 // pred_fallthru
      _
    %269 = vsyncpa [#allocation3], 1
    %270 = vsyncpa [#allocation6], 1
    %271 = vsyncpa [#allocation4], 1

</llo_original>
